<compile_context>
chip_gen: v5e
topology: v5e:2x2
jax: 0.10.0
libtpu: 0.0.40
codegen_flags: <defaults>
</compile_context>

<pallas_src>
import jax
import jax.numpy as jnp
from jax.experimental import pallas as pl
from jax.experimental.pallas import tpu as pltpu


def _round_up(x, m):
    return ((x + m - 1) // m) * m


def make_kernel(W, HW, hw_inv):
    def kernel(x_ref, wc_ref, bc_ref, o_ref):
        # x_ref : ((H+2)*W, Kc) bf16 -- dw-packed, spatially padded image.
        # wc_ref: (3, Kc, C_pad) bf16 -- conv weight; rows ordered (dw, c) per dh.
        # bc_ref: (1, C_pad) f32.     o_ref: (1, C_pad) f32 (pooled features).
        acc = jnp.dot(x_ref[pl.ds(0, HW), :], wc_ref[0],
                      preferred_element_type=jnp.float32)
        acc += jnp.dot(x_ref[pl.ds(W, HW), :], wc_ref[1],
                       preferred_element_type=jnp.float32)
        acc += jnp.dot(x_ref[pl.ds(2 * W, HW), :], wc_ref[2],
                       preferred_element_type=jnp.float32)
        feat = jnp.maximum(acc + bc_ref[...], 0.0)            # bias + ReLU (f32 VPU)
        o_ref[...] = jnp.sum(feat, axis=0, keepdims=True) * hw_inv   # GAP

    return kernel


def rsna24_forward(x_nchw, wc, bc, wh, bh):
    """x_nchw: (B, in_c, H, W) f32; wc: (9*in_c, C) im2col-layout conv weight
    (rows ordered (dh, dw, c)); bc: (1, C); wh: (C, n_classes);
    bh: (1, n_classes).  Returns (B, n_classes) f32 logits."""
    B, in_c, H, W = x_nchw.shape
    K9, C = wc.shape
    assert K9 == 9 * in_c
    n_classes = wh.shape[1]

    Kd = 3 * in_c                     # dw-packed contraction depth (90)
    Kc = _round_up(Kd, 128)           # lane-dense K (128)
    C_pad = _round_up(C, 128)         # 64 -> 128
    HW = H * W
    FLAT = (H + 2) * W                # rows of the dw-packed, row-padded image

    # ---- plain-JAX glue: NCHW -> NHWC, zero-pad spatially, pack the 3 dw
    #      taps along channels (K) once.  No per-tile duplication in HBM. ----
    x = jnp.transpose(x_nchw, (0, 2, 3, 1)).astype(jnp.float32)      # (B,H,W,ic)
    xp = jnp.pad(x, ((0, 0), (1, 1), (1, 1), (0, 0)))                # (B,H+2,W+2,ic)
    xdw = jnp.concatenate([xp[:, :, dw:dw + W, :] for dw in range(3)],
                          axis=-1)                                    # (B,H+2,W,3*ic)
    xdw = xdw.reshape(B, FLAT, Kd)
    xdw = jnp.pad(xdw, ((0, 0), (0, 0), (0, Kc - Kd))).astype(jnp.bfloat16)

    # Conv weight (9*ic, C) rows ordered (dh, dw, c) -> (3, Kc, C_pad) bf16.
    wc_p = wc.astype(jnp.float32).reshape(3, 3 * in_c, C)
    wc_p = jnp.pad(wc_p, ((0, 0), (0, Kc - Kd), (0, C_pad - C))).astype(jnp.bfloat16)
    bc_p = jnp.pad(bc.astype(jnp.float32).reshape(1, C), ((0, 0), (0, C_pad - C)))

    kernel = make_kernel(W=W, HW=HW, hw_inv=1.0 / float(HW))

    pooled = pl.pallas_call(
        kernel,
        out_shape=jax.ShapeDtypeStruct((B, 1, C_pad), jnp.float32),
        grid=(B,),
        in_specs=[
            pl.BlockSpec((None, FLAT, Kc), lambda b: (b, 0, 0)),   # image (per b)
            pl.BlockSpec((3, Kc, C_pad),   lambda b: (0, 0, 0)),   # conv W (resident)
            pl.BlockSpec((1, C_pad),       lambda b: (0, 0)),      # conv b (resident)
        ],
        out_specs=pl.BlockSpec((None, 1, C_pad), lambda b: (b, 0, 0)),
        compiler_params=pltpu.CompilerParams(
            dimension_semantics=("parallel",),        # batch feeds both v7x TCs
            vmem_limit_bytes=16 * 1024 * 1024,        # real footprint << 1 MiB
        ),
    )(xdw, wc_p, bc_p)

    # ---- FC head: one batched matmul in XLA (bf16 operands, f32 accumulate).
    pooled = pooled.reshape(B, C_pad)[:, :C]
    logits = jnp.dot(pooled.astype(jnp.bfloat16), wh.astype(jnp.bfloat16),
                     preferred_element_type=jnp.float32) + bh.reshape(1, -1)
    return logits


def reference_forward(x_nchw, wc, bc, wh, bh):
    """Pure-JAX reference with matching numerics (bf16 matmul operands)."""
    q = lambda a: a.astype(jnp.bfloat16).astype(jnp.float32)
    B, in_c, H, W = x_nchw.shape
    x = jnp.transpose(x_nchw, (0, 2, 3, 1))
    xp = jnp.pad(x, ((0, 0), (1, 1), (1, 1), (0, 0)))
    pats = []
    for dh in range(3):
        for dw in range(3):
            pats.append(xp[:, dh:dh + H, dw:dw + W, :])
    pats = jnp.concatenate(pats, axis=-1).reshape(B * H * W, 9 * in_c)
    feat = jnp.maximum(q(pats) @ q(wc) + bc.reshape(1, -1), 0.0)
    pooled = jnp.mean(feat.reshape(B, H * W, -1), axis=1)
    return q(pooled) @ q(wh) + bh.reshape(1, -1)


if __name__ == "__main__":
    # Shapes consistent with RSNA24Model(in_c=30, n_classes=75), small spatial.
    B, in_c, H, W = 2, 30, 16, 16
    C, n_classes = 64, 75

    key = jax.random.PRNGKey(0)
    kx, kwc, kbc, kwh, kbh = jax.random.split(key, 5)
    x = jax.random.normal(kx, (B, in_c, H, W), dtype=jnp.float32)
    wc = jax.random.normal(kwc, (9 * in_c, C), dtype=jnp.float32) * 0.05
    bc = jax.random.normal(kbc, (1, C), dtype=jnp.float32) * 0.01
    wh = jax.random.normal(kwh, (C, n_classes), dtype=jnp.float32) * 0.05
    bh = jax.random.normal(kbh, (1, n_classes), dtype=jnp.float32) * 0.01

    logits = jax.block_until_ready(rsna24_forward(x, wc, bc, wh, bh))
    ref = jax.block_until_ready(reference_forward(x, wc, bc, wh, bh))

    assert logits.shape == (B, n_classes), logits.shape
    max_err = float(jnp.max(jnp.abs(logits - ref)))
    assert max_err < 1e-2, max_err

    print("KERNEL_OK")
</pallas_src>

<mosaic_0001>
module attributes {stable_mosaic.version = 11 : i64} {
  func.func @kernel(%arg0: i32, %arg1: memref<1x288x128xbf16, #tpu.memory_space<vmem>>, %arg2: memref<3x128x128xbf16, #tpu.memory_space<vmem>>, %arg3: memref<1x128xf32, #tpu.memory_space<vmem>>, %arg4: memref<1x1x128xf32, #tpu.memory_space<vmem>>) attributes {dimension_semantics = [#tpu.dimension_semantics<parallel>], iteration_bounds = array<i64: 2>, scalar_prefetch = 0 : i64, scratch_operands = 0 : i64, tpu.core_type = #tpu.core_type<tc>, window_params = [{transform_indices = @transform_0, window_bounds = array<i64: 1, 288, 128>}, {pipeline_mode = #tpu.pipeline_mode<synchronous>, transform_indices = @transform_1, window_bounds = array<i64: 3, 128, 128>}, {pipeline_mode = #tpu.pipeline_mode<synchronous>, transform_indices = @transform_2, window_bounds = array<i64: 1, 128>}, {transform_indices = @transform_3, window_bounds = array<i64: 1, 1, 128>}]} {
    %c0 = arith.constant 0 : index
    %c0_0 = arith.constant 0 : index
    %c0_1 = arith.constant 0 : index
    %0 = vector.load %arg1[%c0, %c0_0, %c0_1] : memref<1x288x128xbf16, #tpu.memory_space<vmem>>, vector<1x256x128xbf16>
    %1 = vector.shape_cast %0 : vector<1x256x128xbf16> to vector<256x128xbf16>
    %c0_2 = arith.constant 0 : index
    %c0_3 = arith.constant 0 : index
    %c0_4 = arith.constant 0 : index
    %2 = vector.load %arg2[%c0_2, %c0_3, %c0_4] : memref<3x128x128xbf16, #tpu.memory_space<vmem>>, vector<1x128x128xbf16>
    %3 = vector.shape_cast %2 : vector<1x128x128xbf16> to vector<128x128xbf16>
    %cst = arith.constant dense<0.000000e+00> : vector<256x128xf32>
    %4 = tpu.matmul %1, %3, %cst {dimension_numbers = #tpu.dot_dimension_numbers<[1], [0], [0], [1], [0, 0, 1, 1], [], []>} : vector<256x128xbf16>, vector<128x128xbf16>, vector<256x128xf32> -> vector<256x128xf32>
    %c0_5 = arith.constant 0 : index
    %c16 = arith.constant 16 : index
    %c0_6 = arith.constant 0 : index
    %5 = vector.load %arg1[%c0_5, %c16, %c0_6] : memref<1x288x128xbf16, #tpu.memory_space<vmem>>, vector<1x256x128xbf16>
    %6 = vector.shape_cast %5 : vector<1x256x128xbf16> to vector<256x128xbf16>
    %c1 = arith.constant 1 : index
    %c0_7 = arith.constant 0 : index
    %c0_8 = arith.constant 0 : index
    %7 = vector.load %arg2[%c1, %c0_7, %c0_8] : memref<3x128x128xbf16, #tpu.memory_space<vmem>>, vector<1x128x128xbf16>
    %8 = vector.shape_cast %7 : vector<1x128x128xbf16> to vector<128x128xbf16>
    %cst_9 = arith.constant dense<0.000000e+00> : vector<256x128xf32>
    %9 = tpu.matmul %6, %8, %cst_9 {dimension_numbers = #tpu.dot_dimension_numbers<[1], [0], [0], [1], [0, 0, 1, 1], [], []>} : vector<256x128xbf16>, vector<128x128xbf16>, vector<256x128xf32> -> vector<256x128xf32>
    %10 = arith.addf %4, %9 : vector<256x128xf32>
    %c0_10 = arith.constant 0 : index
    %c32 = arith.constant 32 : index
    %c0_11 = arith.constant 0 : index
    %11 = vector.load %arg1[%c0_10, %c32, %c0_11] : memref<1x288x128xbf16, #tpu.memory_space<vmem>>, vector<1x256x128xbf16>
    %12 = vector.shape_cast %11 : vector<1x256x128xbf16> to vector<256x128xbf16>
    %c2 = arith.constant 2 : index
    %c0_12 = arith.constant 0 : index
    %c0_13 = arith.constant 0 : index
    %13 = vector.load %arg2[%c2, %c0_12, %c0_13] : memref<3x128x128xbf16, #tpu.memory_space<vmem>>, vector<1x128x128xbf16>
    %14 = vector.shape_cast %13 : vector<1x128x128xbf16> to vector<128x128xbf16>
    %cst_14 = arith.constant dense<0.000000e+00> : vector<256x128xf32>
    %15 = tpu.matmul %12, %14, %cst_14 {dimension_numbers = #tpu.dot_dimension_numbers<[1], [0], [0], [1], [0, 0, 1, 1], [], []>} : vector<256x128xbf16>, vector<128x128xbf16>, vector<256x128xf32> -> vector<256x128xf32>
    %16 = arith.addf %10, %15 : vector<256x128xf32>
    %c0_15 = arith.constant 0 : index
    %c0_16 = arith.constant 0 : index
    %17 = vector.load %arg3[%c0_15, %c0_16] : memref<1x128xf32, #tpu.memory_space<vmem>>, vector<1x128xf32>
    %18 = vector.broadcast %17 : vector<1x128xf32> to vector<256x128xf32>
    %19 = arith.addf %16, %18 : vector<256x128xf32>
    %cst_17 = arith.constant 0.000000e+00 : f32
    %20 = vector.broadcast %cst_17 : f32 to vector<256x128xf32>
    %21 = arith.maximumf %19, %20 : vector<256x128xf32>
    %cst_18 = arith.constant dense<0.000000e+00> : vector<128xf32>
    %22 = vector.multi_reduction <add>, %21, %cst_18 [0] : vector<256x128xf32> to vector<128xf32>
    %23 = vector.shape_cast %22 : vector<128xf32> to vector<1x128xf32>
    %cst_19 = arith.constant 3.906250e-03 : f32
    %24 = vector.broadcast %cst_19 : f32 to vector<1x128xf32>
    %25 = arith.mulf %23, %24 : vector<1x128xf32>
    %c0_20 = arith.constant 0 : index
    %c0_21 = arith.constant 0 : index
    %c0_22 = arith.constant 0 : index
    %26 = vector.load %arg4[%c0_20, %c0_21, %c0_22] : memref<1x1x128xf32, #tpu.memory_space<vmem>>, vector<1x1x128xf32>
    %27 = vector.shape_cast %26 : vector<1x1x128xf32> to vector<1x128xf32>
    %28 = vector.shape_cast %25 : vector<1x128xf32> to vector<1x1x128xf32>
    tpu.vector_store %arg4[%c0_20, %c0_21, %c0_22], %28 {strides = array<i32>} : memref<1x1x128xf32, #tpu.memory_space<vmem>>, vector<1x1x128xf32>,
    return
  }
  func.func @transform_0(%arg0: i32) -> (i32, i32, i32) {
    %c0_i32 = arith.constant 0 : i32
    %c0_i32_0 = arith.constant 0 : i32
    %c0_i32_1 = arith.constant 0 : i32
    return %arg0, %c0_i32, %c0_i32_0 : i32, i32, i32
  }
  func.func @transform_1(%arg0: i32) -> (i32, i32, i32) {
    %c0_i32 = arith.constant 0 : i32
    %c0_i32_0 = arith.constant 0 : i32
    %c0_i32_1 = arith.constant 0 : i32
    %c0_i32_2 = arith.constant 0 : i32
    return %c0_i32, %c0_i32_0, %c0_i32_1 : i32, i32, i32
  }
  func.func @transform_2(%arg0: i32) -> (i32, i32) {
    %c0_i32 = arith.constant 0 : i32
    %c0_i32_0 = arith.constant 0 : i32
    %c0_i32_1 = arith.constant 0 : i32
    return %c0_i32, %c0_i32_0 : i32, i32
  }
  func.func @transform_3(%arg0: i32) -> (i32, i32, i32) {
    %c0_i32 = arith.constant 0 : i32
    %c0_i32_0 = arith.constant 0 : i32
    %c0_i32_1 = arith.constant 0 : i32
    return %arg0, %c0_i32, %c0_i32_0 : i32, i32, i32
  }
}

</mosaic_0001>

<llo_original>
// kernel: tpu_custom_call.1
$region0: #{tpu_custom_call.1}
  #allocation0 [shape = 'u32[]', space=smem, size = 0x4, offset = 0x4, fixed_abs, tag = 'smem constant byte address 0x4 - core index']
  #allocation1 [shape = 'u32[72,128]{1,0:T(1,128)}', space=vmem, size = 0x9000, scoped, tag = 'internal scratch']
  %s0 = inlined_call_operand.hbm [shape: bf16[2,288,128], index: 0, kind: input, shape index: {}]
  %s1 = inlined_call_operand.hbm [shape: bf16[3,128,128], index: 1, kind: input, shape index: {}]
  %s2 = inlined_call_operand.vmem [shape: f32[1,128], index: 2, kind: input, shape index: {}]
  %s3 = inlined_call_operand.hbm [shape: f32[2,1,128], index: 3, kind: output, shape index: {}]
  %s4 = sld [smem:[#allocation0]]
  $region53: #{tpu_custom_call.1} parent=0
    _
  %s6 = ssub.s32 1, %s4
  %s7 = scalar_select 0, %s6, %s4
  $region1: #{tpu_custom_call.1} parent=0
    #allocation2 [shape = 'u8[147456]{0}', space=vmem, size = 0x24000, scoped, tag = 'input window, operand 0']
    #allocation3 [shape = 's32[2]{0}', space=sflag, size = 0x8, scoped, tag = 'scoped memory for tpu_custom_call.1']
    #allocation4 [shape = 's32[2]{0}', space=sflag, size = 0x8, scoped, tag = 'scoped memory for tpu_custom_call.1']
    #allocation5 [shape = 'u8[98304]{0}', space=vmem, size = 0x18000, scoped, tag = 'input window, operand 1, single buffered']
    #allocation6 [shape = 's32[1]{0}', space=sflag, size = 0x4, scoped, tag = 'scoped memory for tpu_custom_call.1']
    #allocation7 [shape = 'u8[1024]{0}', space=vmem, size = 0x400, scoped, tag = 'output window, operand 0']
    %8 = vsyncpa [#allocation3], 0
    %s9 = scalar_lea.sflag [#allocation3], 1
    %10 = vsyncpa %s9, 0
    %11 = vsyncpa [#allocation6], 0
    %12 = vsyncpa [#allocation4], 0
    %s13 = scalar_lea.sflag [#allocation4], 1
    %14 = vsyncpa %s13, 0
    loop: start=0, step=1, limit=4
    $region2: #{tpu_custom_call.1} parent=1 // loop_pre_header
      _
    $region3: #{tpu_custom_call.1} parent=1 // loop_header
      %s16 = sphi 0, %s20
      %p17 = scmp.ge.s32.totalorder %s16, 4
      %s26 = sphi 0, %s28
      %s29 = sphi 0, %s26
      %s30 = sphi 0, %s29
      %s46 = sphi 0, %s30
      %s50 = sphi 0, %s50
      %s52 = sphi 0, %s50
      %s53 = sphi 0, %s52
      %s67 = sphi 0, %s53
      %s71 = sphi 0, %s71
      %s73 = sphi 0, %s71
      %s74 = sphi 0, %s73
      %s88 = sphi 0, %s74
      %s94 = sphi 0, %s96
      %s97 = sphi 0, %s94
      %s98 = sphi 0, %s97
      %s114 = sphi 0, %s98
    $region4: #{tpu_custom_call.1} parent=1 // loop_header_branch
      %19 = sbr.rel (%p17) target = $region8
    $region5: #{tpu_custom_call.1} parent=1 // loop_body
      %s21 = ssub.s32 %s16, 1
      %s22 = ssub.s32 %s16, 2
      %s23 = sadd.s32 %s16, 1
      %s24 = ssub.s32 %s16, %s23
      %p25 = scmp.eq.s32.totalorder %s24, 0
      %s27 = sadd.s32 %s26, 1
      %s28 = scalar_select %p25, %s26, %s27
      %p31 = pneg %p25
      %p32 = scmp.eq.s32.totalorder %s16, 1
      %p33 = por %p31, %p32
      %p34 = scmp.ne.s32.totalorder %s26, %s29
      %p35 = scmp.eq.s32.totalorder %s16, 0
      %p36 = por %p34, %p35
      %p37 = scmp.ne.s32.totalorder %s26, %s29
      %p38 = scmp.eq.s32.totalorder %s21, 1
      %p39 = por %p37, %p38
      %p40 = scmp.ne.s32.totalorder %s29, %s30
      %p41 = scmp.eq.s32.totalorder %s21, 0
      %p42 = por %p40, %p41
      %p43 = scmp.ne.s32.totalorder %s29, %s30
      %p44 = scmp.eq.s32.totalorder %s22, 1
      %p45 = por %p43, %p44
      %p47 = scmp.ne.s32.totalorder %s30, %s46
      %p48 = scmp.eq.s32.totalorder %s22, 0
      %p49 = por %p47, %p48
      %s51 = sadd.s32 %s50, 1
      %p54 = scmp.eq.s32.totalorder %s16, 1
      %p55 = scmp.ne.s32.totalorder %s50, %s52
      %p56 = scmp.eq.s32.totalorder %s16, 0
      %p57 = por %p55, %p56
      %p58 = scmp.ne.s32.totalorder %s50, %s52
      %p59 = scmp.eq.s32.totalorder %s21, 1
      %p60 = por %p58, %p59
      %p61 = scmp.ne.s32.totalorder %s52, %s53
      %p62 = scmp.eq.s32.totalorder %s21, 0
      %p63 = por %p61, %p62
      %p64 = scmp.ne.s32.totalorder %s52, %s53
      %p65 = scmp.eq.s32.totalorder %s22, 1
      %p66 = por %p64, %p65
      %p68 = scmp.ne.s32.totalorder %s53, %s67
      %p69 = scmp.eq.s32.totalorder %s22, 0
      %p70 = por %p68, %p69
      %s72 = sadd.s32 %s71, 1
      %p75 = scmp.eq.s32.totalorder %s16, 1
      %p76 = scmp.ne.s32.totalorder %s71, %s73
      %p77 = scmp.eq.s32.totalorder %s16, 0
      %p78 = por %p76, %p77
      %p79 = scmp.ne.s32.totalorder %s71, %s73
      %p80 = scmp.eq.s32.totalorder %s21, 1
      %p81 = por %p79, %p80
      %p82 = scmp.ne.s32.totalorder %s73, %s74
      %p83 = scmp.eq.s32.totalorder %s21, 0
      %p84 = por %p82, %p83
      %p85 = scmp.ne.s32.totalorder %s73, %s74
      %p86 = scmp.eq.s32.totalorder %s22, 1
      %p87 = por %p85, %p86
      %p89 = scmp.ne.s32.totalorder %s74, %s88
      %p90 = scmp.eq.s32.totalorder %s22, 0
      %p91 = por %p89, %p90
      %s92 = ssub.s32 %s16, %s23
      %p93 = scmp.eq.s32.totalorder %s92, 0
      %s95 = sadd.s32 %s94, 1
      %s96 = scalar_select %p93, %s94, %s95
      %p99 = pneg %p93
      %p100 = scmp.eq.s32.totalorder %s16, 1
      %p101 = por %p99, %p100
      %p102 = scmp.ne.s32.totalorder %s94, %s97
      %p103 = scmp.eq.s32.totalorder %s16, 0
      %p104 = por %p102, %p103
      %p105 = scmp.ne.s32.totalorder %s94, %s97
      %p106 = scmp.eq.s32.totalorder %s21, 1
      %p107 = por %p105, %p106
      %p108 = scmp.ne.s32.totalorder %s97, %s98
      %p109 = scmp.eq.s32.totalorder %s21, 0
      %p110 = por %p108, %p109
      %p111 = scmp.ne.s32.totalorder %s97, %s98
      %p112 = scmp.eq.s32.totalorder %s22, 1
      %p113 = por %p111, %p112
      %p115 = scmp.ne.s32.totalorder %s98, %s114
      %p116 = scmp.eq.s32.totalorder %s22, 0
      %p117 = por %p115, %p116
      %p118 = scmp.le.s32.totalorder 1, %s16
      %p119 = scmp.lt.s32.totalorder %s16, 3
      %p120 = pnand %p118, %p119
      %p121 = pneg %p120
      // Predicated region
      $region9: #{tpu_custom_call.1} parent=5 // pred_check
        _
      $region10: #{tpu_custom_call.1} parent=5 // pred_check_branch
        %123 = sbr.rel (%p120) target = $region12
      $region11: #{tpu_custom_call.1} parent=5 // pred_region
        %s124 = ssub.s32 %s16, 1
        // Predicated region
        $region13: #{tpu_custom_call.1} parent=11 // pred_check
          %p125 = pneg %p63
        $region14: #{tpu_custom_call.1} parent=11 // pred_check_branch
          %127 = sbr.rel (%p125) target = $region16
        $region15: #{tpu_custom_call.1} parent=11 // pred_region
          %129 = vsyncadd [#allocation6], 0
          %s130 = sshll.u32 %s1, 4
          %s131 = int_to_ptr.hbm [resolvable:$true] %s130
          %s132 = sshll.u32 [#allocation5], 4
          %s133 = int_to_ptr.vmem [resolvable:$true] %s132
          %138 = dma.hbm_to_vmem [thread:$0]  %s131, 3072, %s133, [#allocation6], 64, 64, 4
        $region16: #{tpu_custom_call.1} parent=11 // pred_fallthru
          _
        // Predicated region
        $region17: #{tpu_custom_call.1} parent=11 // pred_check
          %p139 = pneg %p84
        $region18: #{tpu_custom_call.1} parent=11 // pred_check_branch
          %141 = sbr.rel (%p139) target = $region20
        $region19: #{tpu_custom_call.1} parent=11 // pred_region
          _
        $region20: #{tpu_custom_call.1} parent=11 // pred_fallthru
          _
      $region12: #{tpu_custom_call.1} parent=5 // pred_fallthru
        _
      %p142 = scmp.lt.s32.totalorder %s16, 2
      // Predicated region
      $region21: #{tpu_custom_call.1} parent=5 // pred_check
        %p143 = pneg %p142
      $region22: #{tpu_custom_call.1} parent=5 // pred_check_branch
        %145 = sbr.rel (%p143) target = $region24
      $region23: #{tpu_custom_call.1} parent=5 // pred_region
        // Predicated region
        $region25: #{tpu_custom_call.1} parent=23 // pred_check
          %p146 = pneg %p36
        $region26: #{tpu_custom_call.1} parent=23 // pred_check_branch
          %148 = sbr.rel (%p146) target = $region28
        $region27: #{tpu_custom_call.1} parent=23 // pred_region
          %s149 = sand.u32 %s26, 1
          %s150 = scalar_lea.sflag [#allocation3], %s149
          %s151 = sand.u32 %s26, 1
          %s152 = smul.addr %s151, 144
          %s153 = scalar_lea.vmem [#allocation2], %s152
          %155 = vsyncadd %s150, 0
          %s156 = smul.addr %s16, 36
          %s157 = smul.addr %s156, 4
          %s158 = scalar_lea.hbm %s0, %s157
          %s159 = sshll.u32 %s158, 4
          %s160 = int_to_ptr.hbm [resolvable:$true] %s159
          %s161 = sshll.u32 %s153, 4
          %s162 = int_to_ptr.vmem [resolvable:$true] %s161
          %167 = dma.hbm_to_vmem [thread:$0]  %s160, 2304, %s162, %s150, 64, 64, 4
        $region28: #{tpu_custom_call.1} parent=23 // pred_fallthru
          _
      $region24: #{tpu_custom_call.1} parent=5 // pred_fallthru
        _
      %p168 = scmp.le.s32.totalorder 1, %s16
      %p169 = scmp.lt.s32.totalorder %s16, 3
      %p170 = pnand %p168, %p169
      %p171 = pneg %p170
      // Predicated region
      $region29: #{tpu_custom_call.1} parent=5 // pred_check
        _
      $region30: #{tpu_custom_call.1} parent=5 // pred_check_branch
        %173 = sbr.rel (%p170) target = $region32
      $region31: #{tpu_custom_call.1} parent=5 // pred_region
        %s174 = ssub.s32 %s16, 1
        %s175 = sand.u32 %s29, 1
        %s176 = scalar_lea.sflag [#allocation3], %s175
        %s177 = sand.u32 %s29, 1
        %s178 = smul.addr %s177, 144
        %s179 = scalar_lea.vmem [#allocation2], %s178
        // Predicated region
        $region33: #{tpu_custom_call.1} parent=31 // pred_check
          %p180 = pneg %p42
        $region34: #{tpu_custom_call.1} parent=31 // pred_check_branch
          %182 = sbr.rel (%p180) target = $region36
        $region35: #{tpu_custom_call.1} parent=31 // pred_region
          %184 = dma.done %s176, 2304
        $region36: #{tpu_custom_call.1} parent=31 // pred_fallthru
          _
        // Predicated region
        $region37: #{tpu_custom_call.1} parent=31 // pred_check
          %p185 = pneg %p63
        $region38: #{tpu_custom_call.1} parent=31 // pred_check_branch
          %187 = sbr.rel (%p185) target = $region40
        $region39: #{tpu_custom_call.1} parent=31 // pred_region
          %189 = dma.done [#allocation6], 3072
        $region40: #{tpu_custom_call.1} parent=31 // pred_fallthru
          _
        %s190 = sand.u32 %s29, 1
        %s191 = scalar_lea.sflag [#allocation3], %s190
        %s192 = sand.u32 %s29, 1
        %s193 = smul.addr %s192, 144
        %s194 = scalar_lea.vmem [#allocation2], %s193
        %p195 = pneg %p42
        %p196 = pneg %p39
        %p197 = pneg %p63
        %p198 = pneg %p60
        %p199 = pneg %p84
        %p200 = pneg %p81
        %p201 = pneg %p110
        %p202 = pneg %p107
        %s203 = sand.u32 %s97, 1
        %s204 = scalar_lea.sflag [#allocation4], %s203
        %s205 = sand.u32 %s97, 1
        %s206 = scalar_lea.vmem [#allocation7], %s205
        %v207 = vld [vmem:[%s179] sm:$0xf]
        %v208 = vld [vmem:[%s179 + $0x4] sm:$0xf]
        %v209 = vld [vmem:[%s179 + $0x8] sm:$0xf]
        %v210 = vld [vmem:[%s179 + $0xc] sm:$0xf]
        %v211 = vld [vmem:[%s179 + $0x10] sm:$0xf]
        %v212 = vld [vmem:[%s179 + $0x14] sm:$0xf]
        %v213 = vld [vmem:[%s179 + $0x18] sm:$0xf]
        %v214 = vld [vmem:[%s179 + $0x1c] sm:$0xf]
        %v215 = vld [vmem:[%s179 + $0x20] sm:$0xf]
        %v216 = vld [vmem:[%s179 + $0x24] sm:$0xf]
        %v217 = vld [vmem:[%s179 + $0x28] sm:$0xf]
        %v218 = vld [vmem:[%s179 + $0x2c] sm:$0xf]
        %v219 = vld [vmem:[%s179 + $0x30] sm:$0xf]
        %v220 = vld [vmem:[%s179 + $0x34] sm:$0xf]
        %v221 = vld [vmem:[%s179 + $0x38] sm:$0xf]
        %v222 = vld [vmem:[%s179 + $0x3c] sm:$0xf]
        %v223 = vld [vmem:[%s179 + $0x40] sm:$0xf]
        %v224 = vld [vmem:[%s179 + $0x44] sm:$0xf]
        %v225 = vld [vmem:[%s179 + $0x48] sm:$0xf]
        %v226 = vld [vmem:[%s179 + $0x4c] sm:$0xf]
        %v227 = vld [vmem:[%s179 + $0x50] sm:$0xf]
        %v228 = vld [vmem:[%s179 + $0x54] sm:$0xf]
        %v229 = vld [vmem:[%s179 + $0x58] sm:$0xf]
        %v230 = vld [vmem:[%s179 + $0x5c] sm:$0xf]
        %v231 = vld [vmem:[%s179 + $0x60] sm:$0xf]
        %v232 = vld [vmem:[%s179 + $0x64] sm:$0xf]
        %v233 = vld [vmem:[%s179 + $0x68] sm:$0xf]
        %v234 = vld [vmem:[%s179 + $0x6c] sm:$0xf]
        %v235 = vld [vmem:[%s179 + $0x70] sm:$0xf]
        %v236 = vld [vmem:[%s179 + $0x74] sm:$0xf]
        %v237 = vld [vmem:[%s179 + $0x78] sm:$0xf]
        %v238 = vld [vmem:[%s179 + $0x7c] sm:$0xf]
        %v239 = vld [vmem:[#allocation5] sm:$0xf]
        %v240 = vld [vmem:[#allocation5 + $0x4] sm:$0xf]
        %v241 = vld [vmem:[#allocation5 + $0x8] sm:$0xf]
        %v242 = vld [vmem:[#allocation5 + $0xc] sm:$0xf]
        %v243 = vld [vmem:[#allocation5 + $0x10] sm:$0xf]
        %v244 = vld [vmem:[#allocation5 + $0x14] sm:$0xf]
        %v245 = vld [vmem:[#allocation5 + $0x18] sm:$0xf]
        %v246 = vld [vmem:[#allocation5 + $0x1c] sm:$0xf]
        %v247 = vld [vmem:[#allocation5 + $0x20] sm:$0xf]
        %v248 = vld [vmem:[#allocation5 + $0x24] sm:$0xf]
        %v249 = vld [vmem:[#allocation5 + $0x28] sm:$0xf]
        %v250 = vld [vmem:[#allocation5 + $0x2c] sm:$0xf]
        %v251 = vld [vmem:[#allocation5 + $0x30] sm:$0xf]
        %v252 = vld [vmem:[#allocation5 + $0x34] sm:$0xf]
        %v253 = vld [vmem:[#allocation5 + $0x38] sm:$0xf]
        %v254 = vld [vmem:[#allocation5 + $0x3c] sm:$0xf]
        %v255 = vld [vmem:[%s179 + $0x80] sm:$0xf]
        %v256 = vld [vmem:[%s179 + $0x84] sm:$0xf]
        %s257 = scalar_lea.vmem [#allocation5], 64
        %v258 = vld [vmem:[%s257] sm:$0xf]
        %v259 = vld [vmem:[%s257 + $0x4] sm:$0xf]
        %v260 = vld [vmem:[%s257 + $0x8] sm:$0xf]
        %v261 = vld [vmem:[%s257 + $0xc] sm:$0xf]
        %v262 = vld [vmem:[%s257 + $0x10] sm:$0xf]
        %v263 = vld [vmem:[%s257 + $0x14] sm:$0xf]
        %v264 = vld [vmem:[%s257 + $0x18] sm:$0xf]
        %v265 = vld [vmem:[%s257 + $0x1c] sm:$0xf]
        %v266 = vld [vmem:[%s257 + $0x20] sm:$0xf]
        %v267 = vld [vmem:[%s257 + $0x24] sm:$0xf]
        %v268 = vld [vmem:[%s257 + $0x28] sm:$0xf]
        %v269 = vld [vmem:[%s257 + $0x2c] sm:$0xf]
        %v270 = vld [vmem:[%s257 + $0x30] sm:$0xf]
        %v271 = vld [vmem:[%s257 + $0x34] sm:$0xf]
        %v272 = vld [vmem:[%s257 + $0x38] sm:$0xf]
        %v273 = vld [vmem:[%s257 + $0x3c] sm:$0xf]
        %v306 = vunpack.c.l.b16 %v209
        %v307 = vunpack.c.l.b16 %v210
        %v308 = vunpack.c.l.b16 %v211
        %v309 = vunpack.c.l.b16 %v212
        %v310 = vunpack.c.l.b16 %v213
        %v311 = vunpack.c.l.b16 %v214
        %v312 = vunpack.c.l.b16 %v215
        %v313 = vunpack.c.l.b16 %v216
        %v314 = vunpack.c.l.b16 %v217
        %v315 = vunpack.c.l.b16 %v218
        %v316 = vunpack.c.l.b16 %v219
        %v317 = vunpack.c.l.b16 %v220
        %v318 = vunpack.c.l.b16 %v221
        %v319 = vunpack.c.l.b16 %v222
        %v320 = vunpack.c.l.b16 %v223
        %v321 = vunpack.c.l.b16 %v224
        %v322 = vunpack.c.l.b16 %v225
        %v323 = vunpack.c.l.b16 %v226
        %v324 = vunpack.c.l.b16 %v227
        %v325 = vunpack.c.l.b16 %v228
        %v326 = vunpack.c.l.b16 %v229
        %v327 = vunpack.c.l.b16 %v230
        %v328 = vunpack.c.l.b16 %v231
        %v329 = vunpack.c.l.b16 %v232
        %v330 = vunpack.c.l.b16 %v233
        %v331 = vunpack.c.l.b16 %v234
        %v332 = vunpack.c.l.b16 %v235
        %v333 = vunpack.c.l.b16 %v236
        %v334 = vunpack.c.l.b16 %v237
        %v335 = vunpack.c.l.b16 %v238
        %v336 = vunpack.c.l.b16 %v255
        %v337 = vunpack.c.l.b16 %v256
        %v338 = vpack.c.b16 %v307, %v306
        %v339 = vpack.c.b16 %v309, %v308
        %v340 = vpack.c.b16 %v311, %v310
        %v341 = vpack.c.b16 %v313, %v312
        %v342 = vpack.c.b16 %v315, %v314
        %v343 = vpack.c.b16 %v317, %v316
        %v344 = vpack.c.b16 %v319, %v318
        %v345 = vpack.c.b16 %v321, %v320
        %v346 = vpack.c.b16 %v323, %v322
        %v347 = vpack.c.b16 %v325, %v324
        %v348 = vpack.c.b16 %v327, %v326
        %v349 = vpack.c.b16 %v329, %v328
        %v350 = vpack.c.b16 %v331, %v330
        %v351 = vpack.c.b16 %v333, %v332
        %v352 = vpack.c.b16 %v335, %v334
        %v353 = vpack.c.b16 %v337, %v336
        %v386 = vunpack.c.l.b16 %v258
        %v387 = vunpack.c.l.b16 %v259
        %v388 = vunpack.c.l.b16 %v260
        %v389 = vunpack.c.l.b16 %v261
        %v390 = vunpack.c.l.b16 %v262
        %v391 = vunpack.c.l.b16 %v263
        %v392 = vunpack.c.l.b16 %v264
        %v393 = vunpack.c.l.b16 %v265
        %v394 = vunpack.c.l.b16 %v266
        %v395 = vunpack.c.l.b16 %v267
        %v396 = vunpack.c.l.b16 %v268
        %v397 = vunpack.c.l.b16 %v269
        %v398 = vunpack.c.l.b16 %v270
        %v399 = vunpack.c.l.b16 %v271
        %v400 = vunpack.c.l.b16 %v272
        %v401 = vunpack.c.l.b16 %v273
        %v402 = vpack.c.b16 %v387, %v386
        %v403 = vpack.c.b16 %v389, %v388
        %v404 = vpack.c.b16 %v391, %v390
        %v405 = vpack.c.b16 %v393, %v392
        %v406 = vpack.c.b16 %v395, %v394
        %v407 = vpack.c.b16 %v397, %v396
        %v408 = vpack.c.b16 %v399, %v398
        %v409 = vpack.c.b16 %v401, %v400
        %418 = vmatpush.bf16.msra.mxu0 %v409
        %419 = vmatpush.bf16.msra.mxu0 %v408
        %420 = vmatpush.bf16.msra.mxu0 %v407
        %421 = vmatpush.bf16.msra.mxu0 %v406
        %422 = vmatpush.bf16.msra.mxu0 %v405
        %423 = vmatpush.bf16.msra.mxu0 %v404
        %424 = vmatpush.bf16.msra.mxu0 %v403
        %425 = vmatpush.bf16.msra.mxu0 %v402
        %426 = vmatmul.bf16.gmra.mxu0 %v338
        %v427 = vpop.f32.mrf.mxu0
        %v428 = vadd.f32 0.0, %v427
        %v429 = vpop.f32.mrf.mxu0
        %v430 = vadd.f32 0.0, %v429
        %431 = vmatmul.bf16.gmra.mxu0 %v339
        %v432 = vpop.f32.mrf.mxu0
        %v433 = vadd.f32 0.0, %v432
        %v434 = vpop.f32.mrf.mxu0
        %v435 = vadd.f32 0.0, %v434
        %436 = vmatmul.bf16.gmra.mxu0 %v340
        %v437 = vpop.f32.mrf.mxu0
        %v438 = vadd.f32 0.0, %v437
        %v439 = vpop.f32.mrf.mxu0
        %v440 = vadd.f32 0.0, %v439
        %441 = vmatmul.bf16.gmra.mxu0 %v341
        %v442 = vpop.f32.mrf.mxu0
        %v443 = vadd.f32 0.0, %v442
        %v444 = vpop.f32.mrf.mxu0
        %v445 = vadd.f32 0.0, %v444
        %446 = vmatmul.bf16.gmra.mxu0 %v342
        %v447 = vpop.f32.mrf.mxu0
        %v448 = vadd.f32 0.0, %v447
        %v449 = vpop.f32.mrf.mxu0
        %v450 = vadd.f32 0.0, %v449
        %451 = vmatmul.bf16.gmra.mxu0 %v343
        %v452 = vpop.f32.mrf.mxu0
        %v453 = vadd.f32 0.0, %v452
        %v454 = vpop.f32.mrf.mxu0
        %v455 = vadd.f32 0.0, %v454
        %456 = vmatmul.bf16.gmra.mxu0 %v344
        %v457 = vpop.f32.mrf.mxu0
        %v458 = vadd.f32 0.0, %v457
        %v459 = vpop.f32.mrf.mxu0
        %v460 = vadd.f32 0.0, %v459
        %461 = vmatmul.bf16.gmra.mxu0 %v345
        %v462 = vpop.f32.mrf.mxu0
        %v463 = vadd.f32 0.0, %v462
        %v464 = vpop.f32.mrf.mxu0
        %v465 = vadd.f32 0.0, %v464
        %466 = vmatmul.bf16.gmra.mxu0 %v346
        %v467 = vpop.f32.mrf.mxu0
        %v468 = vadd.f32 0.0, %v467
        %v469 = vpop.f32.mrf.mxu0
        %v470 = vadd.f32 0.0, %v469
        %471 = vmatmul.bf16.gmra.mxu0 %v347
        %v472 = vpop.f32.mrf.mxu0
        %v473 = vadd.f32 0.0, %v472
        %v474 = vpop.f32.mrf.mxu0
        %v475 = vadd.f32 0.0, %v474
        %476 = vmatmul.bf16.gmra.mxu0 %v348
        %v477 = vpop.f32.mrf.mxu0
        %v478 = vadd.f32 0.0, %v477
        %v479 = vpop.f32.mrf.mxu0
        %v480 = vadd.f32 0.0, %v479
        %481 = vmatmul.bf16.gmra.mxu0 %v349
        %v482 = vpop.f32.mrf.mxu0
        %v483 = vadd.f32 0.0, %v482
        %v484 = vpop.f32.mrf.mxu0
        %v485 = vadd.f32 0.0, %v484
        %486 = vmatmul.bf16.gmra.mxu0 %v350
        %v487 = vpop.f32.mrf.mxu0
        %v488 = vadd.f32 0.0, %v487
        %v489 = vpop.f32.mrf.mxu0
        %v490 = vadd.f32 0.0, %v489
        %491 = vmatmul.bf16.gmra.mxu0 %v351
        %v492 = vpop.f32.mrf.mxu0
        %v493 = vadd.f32 0.0, %v492
        %v494 = vpop.f32.mrf.mxu0
        %v495 = vadd.f32 0.0, %v494
        %496 = vmatmul.bf16.gmra.mxu0 %v352
        %v497 = vpop.f32.mrf.mxu0
        %v498 = vadd.f32 0.0, %v497
        %v499 = vpop.f32.mrf.mxu0
        %v500 = vadd.f32 0.0, %v499
        %501 = vmatmul.bf16.gmra.mxu0 %v353
        %v502 = vpop.f32.mrf.mxu0
        %v503 = vadd.f32 0.0, %v502
        %v504 = vpop.f32.mrf.mxu0
        %v505 = vadd.f32 0.0, %v504
        %506 = vdwg.mxu0
        %v509 = vunpack.c.l.b16 %v207
        %v510 = vunpack.c.l.b16 %v208
        %v511 = vpack.c.b16 %v510, %v509
        %v529 = vunpack.c.l.b16 %v239
        %v530 = vunpack.c.l.b16 %v240
        %v531 = vunpack.c.l.b16 %v241
        %v532 = vunpack.c.l.b16 %v242
        %v533 = vunpack.c.l.b16 %v243
        %v534 = vunpack.c.l.b16 %v244
        %v535 = vunpack.c.l.b16 %v245
        %v536 = vunpack.c.l.b16 %v246
        %v537 = vunpack.c.l.b16 %v247
        %v538 = vunpack.c.l.b16 %v248
        %v539 = vunpack.c.l.b16 %v249
        %v540 = vunpack.c.l.b16 %v250
        %v541 = vunpack.c.l.b16 %v251
        %v542 = vunpack.c.l.b16 %v252
        %v543 = vunpack.c.l.b16 %v253
        %v544 = vunpack.c.l.b16 %v254
        %v545 = vpack.c.b16 %v530, %v529
        %v546 = vpack.c.b16 %v532, %v531
        %v547 = vpack.c.b16 %v534, %v533
        %v548 = vpack.c.b16 %v536, %v535
        %v549 = vpack.c.b16 %v538, %v537
        %v550 = vpack.c.b16 %v540, %v539
        %v551 = vpack.c.b16 %v542, %v541
        %v552 = vpack.c.b16 %v544, %v543
        %561 = vmatpush.bf16.msra.mxu0 %v552
        %562 = vmatpush.bf16.msra.mxu0 %v551
        %563 = vmatpush.bf16.msra.mxu0 %v550
        %564 = vmatpush.bf16.msra.mxu0 %v549
        %565 = vmatpush.bf16.msra.mxu0 %v548
        %566 = vmatpush.bf16.msra.mxu0 %v547
        %567 = vmatpush.bf16.msra.mxu0 %v546
        %568 = vmatpush.bf16.msra.mxu0 %v545
        %569 = vmatmul.bf16.gmra.mxu0 %v511
        %v570 = vpop.f32.mrf.mxu0
        %v571 = vadd.f32 %v428, %v570
        %v572 = vpop.f32.mrf.mxu0
        %v573 = vadd.f32 %v430, %v572
        %574 = vmatmul.bf16.gmra.mxu0 %v338
        %v575 = vpop.f32.mrf.mxu0
        %v576 = vadd.f32 %v433, %v575
        %v577 = vpop.f32.mrf.mxu0
        %v578 = vadd.f32 %v435, %v577
        %579 = vmatmul.bf16.gmra.mxu0 %v339
        %v580 = vpop.f32.mrf.mxu0
        %v581 = vadd.f32 %v438, %v580
        %v582 = vpop.f32.mrf.mxu0
        %v583 = vadd.f32 %v440, %v582
        %584 = vmatmul.bf16.gmra.mxu0 %v340
        %v585 = vpop.f32.mrf.mxu0
        %v586 = vadd.f32 %v443, %v585
        %v587 = vpop.f32.mrf.mxu0
        %v588 = vadd.f32 %v445, %v587
        %589 = vmatmul.bf16.gmra.mxu0 %v341
        %v590 = vpop.f32.mrf.mxu0
        %v591 = vadd.f32 %v448, %v590
        %v592 = vpop.f32.mrf.mxu0
        %v593 = vadd.f32 %v450, %v592
        %594 = vmatmul.bf16.gmra.mxu0 %v342
        %v595 = vpop.f32.mrf.mxu0
        %v596 = vadd.f32 %v453, %v595
        %v597 = vpop.f32.mrf.mxu0
        %v598 = vadd.f32 %v455, %v597
        %599 = vmatmul.bf16.gmra.mxu0 %v343
        %v600 = vpop.f32.mrf.mxu0
        %v601 = vadd.f32 %v458, %v600
        %v602 = vpop.f32.mrf.mxu0
        %v603 = vadd.f32 %v460, %v602
        %604 = vmatmul.bf16.gmra.mxu0 %v344
        %v605 = vpop.f32.mrf.mxu0
        %v606 = vadd.f32 %v463, %v605
        %v607 = vpop.f32.mrf.mxu0
        %v608 = vadd.f32 %v465, %v607
        %609 = vmatmul.bf16.gmra.mxu0 %v345
        %v610 = vpop.f32.mrf.mxu0
        %v611 = vadd.f32 %v468, %v610
        %v612 = vpop.f32.mrf.mxu0
        %v613 = vadd.f32 %v470, %v612
        %614 = vmatmul.bf16.gmra.mxu0 %v346
        %v615 = vpop.f32.mrf.mxu0
        %v616 = vadd.f32 %v473, %v615
        %v617 = vpop.f32.mrf.mxu0
        %v618 = vadd.f32 %v475, %v617
        %619 = vmatmul.bf16.gmra.mxu0 %v347
        %v620 = vpop.f32.mrf.mxu0
        %v621 = vadd.f32 %v478, %v620
        %v622 = vpop.f32.mrf.mxu0
        %v623 = vadd.f32 %v480, %v622
        %624 = vmatmul.bf16.gmra.mxu0 %v348
        %v625 = vpop.f32.mrf.mxu0
        %v626 = vadd.f32 %v483, %v625
        %v627 = vpop.f32.mrf.mxu0
        %v628 = vadd.f32 %v485, %v627
        %629 = vmatmul.bf16.gmra.mxu0 %v349
        %v630 = vpop.f32.mrf.mxu0
        %v631 = vadd.f32 %v488, %v630
        %v632 = vpop.f32.mrf.mxu0
        %v633 = vadd.f32 %v490, %v632
        %634 = vmatmul.bf16.gmra.mxu0 %v350
        %v635 = vpop.f32.mrf.mxu0
        %v636 = vadd.f32 %v493, %v635
        %v637 = vpop.f32.mrf.mxu0
        %v638 = vadd.f32 %v495, %v637
        %639 = vmatmul.bf16.gmra.mxu0 %v351
        %v640 = vpop.f32.mrf.mxu0
        %v641 = vadd.f32 %v498, %v640
        %v642 = vpop.f32.mrf.mxu0
        %v643 = vadd.f32 %v500, %v642
        %644 = vmatmul.bf16.gmra.mxu0 %v352
        %v645 = vpop.f32.mrf.mxu0
        %v646 = vadd.f32 %v503, %v645
        %v647 = vpop.f32.mrf.mxu0
        %v648 = vadd.f32 %v505, %v647
        %649 = vdwg.mxu0
        %v650 = vld [vmem:[%s179 + $0x10] sm:$0xf]
        %v651 = vld [vmem:[%s179 + $0x14] sm:$0xf]
        %v652 = vld [vmem:[%s179 + $0x18] sm:$0xf]
        %v653 = vld [vmem:[%s179 + $0x1c] sm:$0xf]
        %v654 = vld [vmem:[%s179 + $0x20] sm:$0xf]
        %v655 = vld [vmem:[%s179 + $0x24] sm:$0xf]
        %v656 = vld [vmem:[%s179 + $0x28] sm:$0xf]
        %v657 = vld [vmem:[%s179 + $0x2c] sm:$0xf]
        %v658 = vld [vmem:[%s179 + $0x30] sm:$0xf]
        %v659 = vld [vmem:[%s179 + $0x34] sm:$0xf]
        %v660 = vld [vmem:[%s179 + $0x38] sm:$0xf]
        %v661 = vld [vmem:[%s179 + $0x3c] sm:$0xf]
        %v662 = vld [vmem:[%s179 + $0x40] sm:$0xf]
        %v663 = vld [vmem:[%s179 + $0x44] sm:$0xf]
        %v664 = vld [vmem:[%s179 + $0x48] sm:$0xf]
        %v665 = vld [vmem:[%s179 + $0x4c] sm:$0xf]
        %v666 = vld [vmem:[%s179 + $0x50] sm:$0xf]
        %v667 = vld [vmem:[%s179 + $0x54] sm:$0xf]
        %v668 = vld [vmem:[%s179 + $0x58] sm:$0xf]
        %v669 = vld [vmem:[%s179 + $0x5c] sm:$0xf]
        %v670 = vld [vmem:[%s179 + $0x60] sm:$0xf]
        %v671 = vld [vmem:[%s179 + $0x64] sm:$0xf]
        %v672 = vld [vmem:[%s179 + $0x68] sm:$0xf]
        %v673 = vld [vmem:[%s179 + $0x6c] sm:$0xf]
        %v674 = vld [vmem:[%s179 + $0x70] sm:$0xf]
        %v675 = vld [vmem:[%s179 + $0x74] sm:$0xf]
        %v676 = vld [vmem:[%s179 + $0x78] sm:$0xf]
        %v677 = vld [vmem:[%s179 + $0x7c] sm:$0xf]
        %v678 = vld [vmem:[%s179 + $0x80] sm:$0xf]
        %v679 = vld [vmem:[%s179 + $0x84] sm:$0xf]
        %v680 = vld [vmem:[%s179 + $0x88] sm:$0xf]
        %v681 = vld [vmem:[%s179 + $0x8c] sm:$0xf]
        %s682 = scalar_lea.vmem [#allocation5], 128
        %v683 = vld [vmem:[%s682] sm:$0xf]
        %v684 = vld [vmem:[%s682 + $0x4] sm:$0xf]
        %v685 = vld [vmem:[%s682 + $0x8] sm:$0xf]
        %v686 = vld [vmem:[%s682 + $0xc] sm:$0xf]
        %v687 = vld [vmem:[%s682 + $0x10] sm:$0xf]
        %v688 = vld [vmem:[%s682 + $0x14] sm:$0xf]
        %v689 = vld [vmem:[%s682 + $0x18] sm:$0xf]
        %v690 = vld [vmem:[%s682 + $0x1c] sm:$0xf]
        %v691 = vld [vmem:[%s682 + $0x20] sm:$0xf]
        %v692 = vld [vmem:[%s682 + $0x24] sm:$0xf]
        %v693 = vld [vmem:[%s682 + $0x28] sm:$0xf]
        %v694 = vld [vmem:[%s682 + $0x2c] sm:$0xf]
        %v695 = vld [vmem:[%s682 + $0x30] sm:$0xf]
        %v696 = vld [vmem:[%s682 + $0x34] sm:$0xf]
        %v697 = vld [vmem:[%s682 + $0x38] sm:$0xf]
        %v698 = vld [vmem:[%s682 + $0x3c] sm:$0xf]
        %v731 = vunpack.c.l.b16 %v650
        %v732 = vunpack.c.l.b16 %v651
        %v733 = vunpack.c.l.b16 %v652
        %v734 = vunpack.c.l.b16 %v653
        %v735 = vunpack.c.l.b16 %v654
        %v736 = vunpack.c.l.b16 %v655
        %v737 = vunpack.c.l.b16 %v656
        %v738 = vunpack.c.l.b16 %v657
        %v739 = vunpack.c.l.b16 %v658
        %v740 = vunpack.c.l.b16 %v659
        %v741 = vunpack.c.l.b16 %v660
        %v742 = vunpack.c.l.b16 %v661
        %v743 = vunpack.c.l.b16 %v662
        %v744 = vunpack.c.l.b16 %v663
        %v745 = vunpack.c.l.b16 %v664
        %v746 = vunpack.c.l.b16 %v665
        %v747 = vunpack.c.l.b16 %v666
        %v748 = vunpack.c.l.b16 %v667
        %v749 = vunpack.c.l.b16 %v668
        %v750 = vunpack.c.l.b16 %v669
        %v751 = vunpack.c.l.b16 %v670
        %v752 = vunpack.c.l.b16 %v671
        %v753 = vunpack.c.l.b16 %v672
        %v754 = vunpack.c.l.b16 %v673
        %v755 = vunpack.c.l.b16 %v674
        %v756 = vunpack.c.l.b16 %v675
        %v757 = vunpack.c.l.b16 %v676
        %v758 = vunpack.c.l.b16 %v677
        %v759 = vunpack.c.l.b16 %v678
        %v760 = vunpack.c.l.b16 %v679
        %v761 = vunpack.c.l.b16 %v680
        %v762 = vunpack.c.l.b16 %v681
        %v763 = vpack.c.b16 %v732, %v731
        %v764 = vpack.c.b16 %v734, %v733
        %v765 = vpack.c.b16 %v736, %v735
        %v766 = vpack.c.b16 %v738, %v737
        %v767 = vpack.c.b16 %v740, %v739
        %v768 = vpack.c.b16 %v742, %v741
        %v769 = vpack.c.b16 %v744, %v743
        %v770 = vpack.c.b16 %v746, %v745
        %v771 = vpack.c.b16 %v748, %v747
        %v772 = vpack.c.b16 %v750, %v749
        %v773 = vpack.c.b16 %v752, %v751
        %v774 = vpack.c.b16 %v754, %v753
        %v775 = vpack.c.b16 %v756, %v755
        %v776 = vpack.c.b16 %v758, %v757
        %v777 = vpack.c.b16 %v760, %v759
        %v778 = vpack.c.b16 %v762, %v761
        %v811 = vunpack.c.l.b16 %v683
        %v812 = vunpack.c.l.b16 %v684
        %v813 = vunpack.c.l.b16 %v685
        %v814 = vunpack.c.l.b16 %v686
        %v815 = vunpack.c.l.b16 %v687
        %v816 = vunpack.c.l.b16 %v688
        %v817 = vunpack.c.l.b16 %v689
        %v818 = vunpack.c.l.b16 %v690
        %v819 = vunpack.c.l.b16 %v691
        %v820 = vunpack.c.l.b16 %v692
        %v821 = vunpack.c.l.b16 %v693
        %v822 = vunpack.c.l.b16 %v694
        %v823 = vunpack.c.l.b16 %v695
        %v824 = vunpack.c.l.b16 %v696
        %v825 = vunpack.c.l.b16 %v697
        %v826 = vunpack.c.l.b16 %v698
        %v827 = vpack.c.b16 %v812, %v811
        %v828 = vpack.c.b16 %v814, %v813
        %v829 = vpack.c.b16 %v816, %v815
        %v830 = vpack.c.b16 %v818, %v817
        %v831 = vpack.c.b16 %v820, %v819
        %v832 = vpack.c.b16 %v822, %v821
        %v833 = vpack.c.b16 %v824, %v823
        %v834 = vpack.c.b16 %v826, %v825
        %843 = vmatpush.bf16.msra.mxu0 %v834
        %844 = vmatpush.bf16.msra.mxu0 %v833
        %845 = vmatpush.bf16.msra.mxu0 %v832
        %846 = vmatpush.bf16.msra.mxu0 %v831
        %847 = vmatpush.bf16.msra.mxu0 %v830
        %848 = vmatpush.bf16.msra.mxu0 %v829
        %849 = vmatpush.bf16.msra.mxu0 %v828
        %850 = vmatpush.bf16.msra.mxu0 %v827
        %851 = vmatmul.bf16.gmra.mxu0 %v763
        %v852 = vpop.f32.mrf.mxu0
        %v853 = vadd.f32 0.0, %v852
        %v854 = vpop.f32.mrf.mxu0
        %v855 = vadd.f32 0.0, %v854
        %856 = vmatmul.bf16.gmra.mxu0 %v764
        %v857 = vpop.f32.mrf.mxu0
        %v858 = vadd.f32 0.0, %v857
        %v859 = vpop.f32.mrf.mxu0
        %v860 = vadd.f32 0.0, %v859
        %861 = vmatmul.bf16.gmra.mxu0 %v765
        %v862 = vpop.f32.mrf.mxu0
        %v863 = vadd.f32 0.0, %v862
        %v864 = vpop.f32.mrf.mxu0
        %v865 = vadd.f32 0.0, %v864
        %866 = vmatmul.bf16.gmra.mxu0 %v766
        %v867 = vpop.f32.mrf.mxu0
        %v868 = vadd.f32 0.0, %v867
        %v869 = vpop.f32.mrf.mxu0
        %v870 = vadd.f32 0.0, %v869
        %871 = vmatmul.bf16.gmra.mxu0 %v767
        %v872 = vpop.f32.mrf.mxu0
        %v873 = vadd.f32 0.0, %v872
        %v874 = vpop.f32.mrf.mxu0
        %v875 = vadd.f32 0.0, %v874
        %876 = vmatmul.bf16.gmra.mxu0 %v768
        %v877 = vpop.f32.mrf.mxu0
        %v878 = vadd.f32 0.0, %v877
        %v879 = vpop.f32.mrf.mxu0
        %v880 = vadd.f32 0.0, %v879
        %881 = vmatmul.bf16.gmra.mxu0 %v769
        %v882 = vpop.f32.mrf.mxu0
        %v883 = vadd.f32 0.0, %v882
        %v884 = vpop.f32.mrf.mxu0
        %v885 = vadd.f32 0.0, %v884
        %886 = vmatmul.bf16.gmra.mxu0 %v770
        %v887 = vpop.f32.mrf.mxu0
        %v888 = vadd.f32 0.0, %v887
        %v889 = vpop.f32.mrf.mxu0
        %v890 = vadd.f32 0.0, %v889
        %891 = vmatmul.bf16.gmra.mxu0 %v771
        %v892 = vpop.f32.mrf.mxu0
        %v893 = vadd.f32 0.0, %v892
        %v894 = vpop.f32.mrf.mxu0
        %v895 = vadd.f32 0.0, %v894
        %896 = vmatmul.bf16.gmra.mxu0 %v772
        %v897 = vpop.f32.mrf.mxu0
        %v898 = vadd.f32 0.0, %v897
        %v899 = vpop.f32.mrf.mxu0
        %v900 = vadd.f32 0.0, %v899
        %901 = vmatmul.bf16.gmra.mxu0 %v773
        %v902 = vpop.f32.mrf.mxu0
        %v903 = vadd.f32 0.0, %v902
        %v904 = vpop.f32.mrf.mxu0
        %v905 = vadd.f32 0.0, %v904
        %906 = vmatmul.bf16.gmra.mxu0 %v774
        %v907 = vpop.f32.mrf.mxu0
        %v908 = vadd.f32 0.0, %v907
        %v909 = vpop.f32.mrf.mxu0
        %v910 = vadd.f32 0.0, %v909
        %911 = vmatmul.bf16.gmra.mxu0 %v775
        %v912 = vpop.f32.mrf.mxu0
        %v913 = vadd.f32 0.0, %v912
        %v914 = vpop.f32.mrf.mxu0
        %v915 = vadd.f32 0.0, %v914
        %916 = vmatmul.bf16.gmra.mxu0 %v776
        %v917 = vpop.f32.mrf.mxu0
        %v918 = vadd.f32 0.0, %v917
        %v919 = vpop.f32.mrf.mxu0
        %v920 = vadd.f32 0.0, %v919
        %921 = vmatmul.bf16.gmra.mxu0 %v777
        %v922 = vpop.f32.mrf.mxu0
        %v923 = vadd.f32 0.0, %v922
        %v924 = vpop.f32.mrf.mxu0
        %v925 = vadd.f32 0.0, %v924
        %926 = vmatmul.bf16.gmra.mxu0 %v778
        %v927 = vpop.f32.mrf.mxu0
        %v928 = vadd.f32 0.0, %v927
        %v929 = vpop.f32.mrf.mxu0
        %v930 = vadd.f32 0.0, %v929
        %931 = vdwg.mxu0
        %v932 = vadd.f32 %v571, %v853
        %v933 = vadd.f32 %v573, %v855
        %v934 = vadd.f32 %v576, %v858
        %v935 = vadd.f32 %v578, %v860
        %v936 = vadd.f32 %v581, %v863
        %v937 = vadd.f32 %v583, %v865
        %v938 = vadd.f32 %v586, %v868
        %v939 = vadd.f32 %v588, %v870
        %v940 = vadd.f32 %v591, %v873
        %v941 = vadd.f32 %v593, %v875
        %v942 = vadd.f32 %v596, %v878
        %v943 = vadd.f32 %v598, %v880
        %v944 = vadd.f32 %v601, %v883
        %v945 = vadd.f32 %v603, %v885
        %v946 = vadd.f32 %v606, %v888
        %v947 = vadd.f32 %v608, %v890
        %v948 = vadd.f32 %v611, %v893
        %v949 = vadd.f32 %v613, %v895
        %v950 = vadd.f32 %v616, %v898
        %v951 = vadd.f32 %v618, %v900
        %v952 = vadd.f32 %v621, %v903
        %v953 = vadd.f32 %v623, %v905
        %v954 = vadd.f32 %v626, %v908
        %v955 = vadd.f32 %v628, %v910
        %v956 = vadd.f32 %v631, %v913
        %v957 = vadd.f32 %v633, %v915
        %v958 = vadd.f32 %v636, %v918
        %v959 = vadd.f32 %v638, %v920
        %v960 = vadd.f32 %v641, %v923
        %v961 = vadd.f32 %v643, %v925
        %v962 = vadd.f32 %v646, %v928
        %v963 = vadd.f32 %v648, %v930
        %v964 = vld [vmem:[%s2] sm:$0x1]
        %v966 = vperm.slane %v964, 0
        %v968 = vadd.f32 %v932, %v966
        %v969 = vadd.f32 %v933, %v966
        %v970 = vadd.f32 %v934, %v966
        %v971 = vadd.f32 %v935, %v966
        %v972 = vadd.f32 %v936, %v966
        %v973 = vadd.f32 %v937, %v966
        %v974 = vadd.f32 %v938, %v966
        %v975 = vadd.f32 %v939, %v966
        %v976 = vadd.f32 %v940, %v966
        %v977 = vadd.f32 %v941, %v966
        %v978 = vadd.f32 %v942, %v966
        %v979 = vadd.f32 %v943, %v966
        %v980 = vadd.f32 %v944, %v966
        %v981 = vadd.f32 %v945, %v966
        %v982 = vadd.f32 %v946, %v966
        %v983 = vadd.f32 %v947, %v966
        %v984 = vadd.f32 %v948, %v966
        %v985 = vadd.f32 %v949, %v966
        %v986 = vadd.f32 %v950, %v966
        %v987 = vadd.f32 %v951, %v966
        %v988 = vadd.f32 %v952, %v966
        %v989 = vadd.f32 %v953, %v966
        %v990 = vadd.f32 %v954, %v966
        %v991 = vadd.f32 %v955, %v966
        %v992 = vadd.f32 %v956, %v966
        %v993 = vadd.f32 %v957, %v966
        %v994 = vadd.f32 %v958, %v966
        %v995 = vadd.f32 %v959, %v966
        %v996 = vadd.f32 %v960, %v966
        %v997 = vadd.f32 %v961, %v966
        %v998 = vadd.f32 %v962, %v966
        %v999 = vadd.f32 %v963, %v966
        %v1000 = vmax.f32 %v968, 0.0
        %v1001 = vmax.f32 %v969, 0.0
        %v1002 = vmax.f32 %v970, 0.0
        %v1003 = vmax.f32 %v971, 0.0
        %v1004 = vmax.f32 %v972, 0.0
        %v1005 = vmax.f32 %v973, 0.0
        %v1006 = vmax.f32 %v974, 0.0
        %v1007 = vmax.f32 %v975, 0.0
        %v1008 = vmax.f32 %v976, 0.0
        %v1009 = vmax.f32 %v977, 0.0
        %v1010 = vmax.f32 %v978, 0.0
        %v1011 = vmax.f32 %v979, 0.0
        %v1012 = vmax.f32 %v980, 0.0
        %v1013 = vmax.f32 %v981, 0.0
        %v1014 = vmax.f32 %v982, 0.0
        %v1015 = vmax.f32 %v983, 0.0
        %v1016 = vmax.f32 %v984, 0.0
        %v1017 = vmax.f32 %v985, 0.0
        %v1018 = vmax.f32 %v986, 0.0
        %v1019 = vmax.f32 %v987, 0.0
        %v1020 = vmax.f32 %v988, 0.0
        %v1021 = vmax.f32 %v989, 0.0
        %v1022 = vmax.f32 %v990, 0.0
        %v1023 = vmax.f32 %v991, 0.0
        %v1024 = vmax.f32 %v992, 0.0
        %v1025 = vmax.f32 %v993, 0.0
        %v1026 = vmax.f32 %v994, 0.0
        %v1027 = vmax.f32 %v995, 0.0
        %v1028 = vmax.f32 %v996, 0.0
        %v1029 = vmax.f32 %v997, 0.0
        %v1030 = vmax.f32 %v998, 0.0
        %v1031 = vmax.f32 %v999, 0.0
        %v1032 = vadd.f32 %v1000, %v1001
        %v1033 = vadd.f32 %v1032, %v1002
        %v1034 = vadd.f32 %v1033, %v1003
        %v1035 = vadd.f32 %v1034, %v1004
        %v1036 = vadd.f32 %v1035, %v1005
        %v1037 = vadd.f32 %v1036, %v1006
        %v1038 = vadd.f32 %v1037, %v1007
        %v1039 = vadd.f32 %v1038, %v1008
        %v1040 = vadd.f32 %v1039, %v1009
        %v1041 = vadd.f32 %v1040, %v1010
        %v1042 = vadd.f32 %v1041, %v1011
        %v1043 = vadd.f32 %v1042, %v1012
        %v1044 = vadd.f32 %v1043, %v1013
        %v1045 = vadd.f32 %v1044, %v1014
        %v1046 = vadd.f32 %v1045, %v1015
        %v1047 = vadd.f32 %v1046, %v1016
        %v1048 = vadd.f32 %v1047, %v1017
        %v1049 = vadd.f32 %v1048, %v1018
        %v1050 = vadd.f32 %v1049, %v1019
        %v1051 = vadd.f32 %v1050, %v1020
        %v1052 = vadd.f32 %v1051, %v1021
        %v1053 = vadd.f32 %v1052, %v1022
        %v1054 = vadd.f32 %v1053, %v1023
        %v1055 = vadd.f32 %v1054, %v1024
        %v1056 = vadd.f32 %v1055, %v1025
        %v1057 = vadd.f32 %v1056, %v1026
        %v1058 = vadd.f32 %v1057, %v1027
        %v1059 = vadd.f32 %v1058, %v1028
        %v1060 = vadd.f32 %v1059, %v1029
        %v1061 = vadd.f32 %v1060, %v1030
        %v1062 = vadd.f32 %v1061, %v1031
        %v1063 = vrot.slane %v1062, 4
        %v1064 = vadd.f32 %v1062, %v1063
        %v1065 = vrot.slane %v1064, 2
        %v1066 = vadd.f32 %v1064, %v1065
        %v1067 = vrot.slane %v1066, 1
        %v1068 = vadd.f32 %v1066, %v1067
        %v1069 = vmul.f32 %v1068, 0.00390625
        %1070 = vst [vmem:[%s206] sm:$0x1] %v1069
        %s1071 = sand.u32 %s97, 1
        %s1072 = scalar_lea.sflag [#allocation4], %s1071
        %s1073 = sand.u32 %s97, 1
        %s1074 = scalar_lea.vmem [#allocation7], %s1073
        // Predicated region
        $region41: #{tpu_custom_call.1} parent=31 // pred_check
          %p1075 = pneg %p107
        $region42: #{tpu_custom_call.1} parent=31 // pred_check_branch
          %1077 = sbr.rel (%p1075) target = $region44
        $region43: #{tpu_custom_call.1} parent=31 // pred_region
          %1079 = vsyncadd %s1072, 0
          %s1080 = scalar_lea.hbm %s3, %s21
          %s1082 = sshll.u32 %s1074, 4
          %s1083 = int_to_ptr.vmem [resolvable:$true] %s1082
          %s1084 = sshll.u32 %s1080, 4
          %s1085 = int_to_ptr.hbm [resolvable:$true] %s1084
          %1087 = dma.vmem_to_hbm [thread:$0]  %s1083, 16, %s1085, %s1072
        $region44: #{tpu_custom_call.1} parent=31 // pred_fallthru
          _
      $region32: #{tpu_custom_call.1} parent=5 // pred_fallthru
        _
      %p1088 = scmp.le.s32.totalorder 2, %s16
      // Predicated region
      $region45: #{tpu_custom_call.1} parent=5 // pred_check
        %p1089 = pneg %p1088
      $region46: #{tpu_custom_call.1} parent=5 // pred_check_branch
        %1091 = sbr.rel (%p1089) target = $region48
      $region47: #{tpu_custom_call.1} parent=5 // pred_region
        %s1092 = ssub.s32 %s16, 2
        // Predicated region
        $region49: #{tpu_custom_call.1} parent=47 // pred_check
          %p1093 = pneg %p113
        $region50: #{tpu_custom_call.1} parent=47 // pred_check_branch
          %1095 = sbr.rel (%p1093) target = $region52
        $region51: #{tpu_custom_call.1} parent=47 // pred_region
          %s1096 = sand.u32 %s98, 1
          %s1097 = scalar_lea.sflag [#allocation4], %s1096
          %s1098 = sand.u32 %s98, 1
          %s1099 = scalar_lea.vmem [#allocation7], %s1098
          %1101 = dma.done %s1097, 16
        $region52: #{tpu_custom_call.1} parent=47 // pred_fallthru
          _
      $region48: #{tpu_custom_call.1} parent=5 // pred_fallthru
        _
    $region6: #{tpu_custom_call.1} parent=1 // loop_footer
      %s20 = sadd.s32 1, %s16
    $region7: #{tpu_custom_call.1} parent=1 // loop_footer_branch
      %15 = sbr.rel target = $region3
    $region8: #{tpu_custom_call.1} parent=1 // loop_exit
      _
    %1102 = vsyncpa [#allocation3], 1
    %s1103 = scalar_lea.sflag [#allocation3], 1
    %1104 = vsyncpa %s1103, 1
    %1105 = vsyncpa [#allocation6], 1
    %1106 = vsyncpa [#allocation4], 1
    %s1107 = scalar_lea.sflag [#allocation4], 1
    %1108 = vsyncpa %s1107, 1

</llo_original>
